<compile_context>
chip_gen: v6e
topology: v6e:2x2x1
jax: 0.10.0
libtpu: 0.0.40
codegen_flags: <defaults>
</compile_context>

<pallas_src>
import jax
import jax.numpy as jnp
from jax import lax
from jax.experimental import pallas as pl
from jax.experimental.pallas import tpu as pltpu


def simple_nn_kernel(ids_ref, emb_ref, w1_ref, b1_ref, w2_ref, b2_ref, out_ref):
    TB, S = ids_ref.shape
    V_pad = emb_ref.shape[0]

    # ---- fused embedding gather + mean(dim=1) ---------------------------------
    # counts[b, v] = #times token v appears in row b  (exact small integers in f32)
    ids = ids_ref[...]                                            # (TB, S) int32
    vocab_iota = lax.broadcasted_iota(jnp.int32, (TB, V_pad), 1)  # (TB, V_pad)
    counts = jnp.zeros((TB, V_pad), jnp.float32)
    for s in range(S):                                            # static, unrolled (S small)
        counts = counts + (ids[:, s:s + 1] == vocab_iota).astype(jnp.float32)

    # One MXU pass replaces gather + mean; f32 accumulate, then 1/S mean scale.
    pooled = jnp.dot(counts, emb_ref[...],
                     preferred_element_type=jnp.float32)          # (TB, E_pad) f32
    pooled = pooled * jnp.float32(1.0 / S)

    # ---- fc1 + ReLU (bf16 MXU feed, f32 accumulate & elementwise) -------------
    h = jnp.dot(pooled.astype(jnp.bfloat16), w1_ref[...],
                preferred_element_type=jnp.float32) + b1_ref[...]
    h = jnp.maximum(h, 0.0)                                       # (TB, H_pad) f32

    # Dropout is identity at inference time (no mask applied).

    # ---- fc2 (lane-dense f32 store) -------------------------------------------
    out_ref[...] = (jnp.dot(h.astype(jnp.bfloat16), w2_ref[...],
                            preferred_element_type=jnp.float32) + b2_ref[...]
                    ).astype(out_ref.dtype)                       # (TB, O_pad)


def simple_nn_forward(ids, embeddings, w1, b1, w2, b2):
    """ids: (B, S) int32. embeddings: (V, E) f32. w1: (E, H), b1: (H,), w2: (H, O), b2: (O,)."""
    B, S = ids.shape
    V, E = embeddings.shape
    H = w1.shape[1]
    O = w2.shape[1]

    LANE = 128
    rup = lambda x, m: -(-x // m) * m
    V_pad, E_pad, H_pad, O_pad = (rup(d, LANE) for d in (V, E, H, O))
    TB = 128 if B >= 128 else 8            # batch tile (sublane multiple; 128 at scale)
    B_pad = rup(B, TB)

    # Zero padding is mathematically inert: padded vocab rows are never selected
    # (ids < V) and padded feature columns/rows contribute exactly 0.
    emb_p = jnp.zeros((V_pad, E_pad), jnp.float32).at[:V, :E].set(embeddings.astype(jnp.float32))
    w1_p = jnp.zeros((E_pad, H_pad), jnp.bfloat16).at[:E, :H].set(w1.astype(jnp.bfloat16))
    b1_p = jnp.zeros((1, H_pad), jnp.float32).at[0, :H].set(b1.astype(jnp.float32))
    w2_p = jnp.zeros((H_pad, O_pad), jnp.bfloat16).at[:H, :O].set(w2.astype(jnp.bfloat16))
    b2_p = jnp.zeros((1, O_pad), jnp.float32).at[0, :O].set(b2.astype(jnp.float32))
    ids_p = jnp.zeros((B_pad, S), jnp.int32).at[:B, :].set(ids.astype(jnp.int32))

    flops = 2 * B_pad * (V_pad * E_pad + E_pad * H_pad + H_pad * O_pad)
    bytes_accessed = (ids_p.size * 4 + emb_p.size * 4
                      + w1_p.size * 2 + w2_p.size * 2
                      + b1_p.size * 4 + b2_p.size * 4
                      + B_pad * O_pad * 4)

    out = pl.pallas_call(
        simple_nn_kernel,
        out_shape=jax.ShapeDtypeStruct((B_pad, O_pad), jnp.float32),
        grid_spec=pltpu.PrefetchScalarGridSpec(
            num_scalar_prefetch=0,
            grid=(B_pad // TB,),
            in_specs=[
                pl.BlockSpec((TB, S), lambda i: (i, 0)),          # ids: batch-tiled stream
                pl.BlockSpec((V_pad, E_pad), lambda i: (0, 0)),   # table: VMEM-resident
                pl.BlockSpec((E_pad, H_pad), lambda i: (0, 0)),   # w1 (bf16), resident
                pl.BlockSpec((1, H_pad), lambda i: (0, 0)),       # b1 (f32)
                pl.BlockSpec((H_pad, O_pad), lambda i: (0, 0)),   # w2 (bf16), resident
                pl.BlockSpec((1, O_pad), lambda i: (0, 0)),       # b2 (f32)
            ],
            out_specs=pl.BlockSpec((TB, O_pad), lambda i: (i, 0)),
        ),
        compiler_params=pltpu.CompilerParams(
            dimension_semantics=("parallel",),                    # megacore / 2-TC sharding
            vmem_limit_bytes=32 * 1024 * 1024,                    # fits v7x 64 MiB physical VMEM
        ),
        cost_estimate=pl.CostEstimate(
            flops=flops, transcendentals=0, bytes_accessed=bytes_accessed),
    )(ids_p, emb_p, w1_p, b1_p, w2_p, b2_p)

    return out[:B, :O]


if __name__ == "__main__":
    # Small shapes consistent with the module's forward.
    VOCAB, EMB_DIM, HIDDEN, OUT, BATCH, SEQ = 32, 16, 32, 8, 4, 8

    key = jax.random.PRNGKey(0)
    k_emb, k_w1, k_b1, k_w2, k_b2, k_ids = jax.random.split(key, 6)

    embeddings = jax.random.normal(k_emb, (VOCAB, EMB_DIM), dtype=jnp.float32)
    w1 = jax.random.normal(k_w1, (EMB_DIM, HIDDEN), dtype=jnp.float32) * 0.1   # fc1.weight.T
    b1 = jax.random.normal(k_b1, (HIDDEN,), dtype=jnp.float32) * 0.1           # fc1.bias
    w2 = jax.random.normal(k_w2, (HIDDEN, OUT), dtype=jnp.float32) * 0.1       # fc2.weight.T
    b2 = jax.random.normal(k_b2, (OUT,), dtype=jnp.float32) * 0.1              # fc2.bias

    ids = jax.random.randint(k_ids, (BATCH, SEQ), 0, VOCAB, dtype=jnp.int32)

    out = jax.block_until_ready(simple_nn_forward(ids, embeddings, w1, b1, w2, b2))
    assert out.shape == (BATCH, OUT)

    # Reference matching the kernel's dtype policy (bf16 MXU feed, f32 accumulate).
    pooled = jnp.take(embeddings, ids, axis=0).mean(axis=1)
    h_ref = jnp.maximum(
        jnp.dot(pooled.astype(jnp.bfloat16), w1.astype(jnp.bfloat16),
                preferred_element_type=jnp.float32) + b1, 0.0)
    ref = jnp.dot(h_ref.astype(jnp.bfloat16), w2.astype(jnp.bfloat16),
                  preferred_element_type=jnp.float32) + b2
    assert jnp.allclose(out, ref, atol=1e-2, rtol=1e-2), float(jnp.max(jnp.abs(out - ref)))

    # Fidelity vs. the pure-f32 PyTorch semantics (difference = bf16 weight feed only).
    ref_f32 = jnp.maximum(pooled @ w1 + b1, 0.0) @ w2 + b2
    assert jnp.allclose(out, ref_f32, atol=5e-2, rtol=5e-2)

    print("KERNEL_OK")
</pallas_src>

<mosaic_0001>
module attributes {stable_mosaic.version = 11 : i64} {
  func.func @simple_nn_kernel(%arg0: i32, %arg1: memref<8x8xi32, #tpu.memory_space<vmem>>, %arg2: memref<128x128xf32, #tpu.memory_space<vmem>>, %arg3: memref<128x128xbf16, #tpu.memory_space<vmem>>, %arg4: memref<1x128xf32, #tpu.memory_space<vmem>>, %arg5: memref<128x128xbf16, #tpu.memory_space<vmem>>, %arg6: memref<1x128xf32, #tpu.memory_space<vmem>>, %arg7: memref<8x128xf32, #tpu.memory_space<vmem>>) attributes {dimension_semantics = [#tpu.dimension_semantics<parallel>], iteration_bounds = array<i64: 1>, scalar_prefetch = 0 : i64, scratch_operands = 0 : i64, tpu.core_type = #tpu.core_type<tc>, window_params = [{transform_indices = @transform_0, window_bounds = array<i64: 8, 8>}, {pipeline_mode = #tpu.pipeline_mode<synchronous>, transform_indices = @transform_1, window_bounds = array<i64: 128, 128>}, {pipeline_mode = #tpu.pipeline_mode<synchronous>, transform_indices = @transform_2, window_bounds = array<i64: 128, 128>}, {pipeline_mode = #tpu.pipeline_mode<synchronous>, transform_indices = @transform_3, window_bounds = array<i64: 1, 128>}, {pipeline_mode = #tpu.pipeline_mode<synchronous>, transform_indices = @transform_4, window_bounds = array<i64: 128, 128>}, {pipeline_mode = #tpu.pipeline_mode<synchronous>, transform_indices = @transform_5, window_bounds = array<i64: 1, 128>}, {transform_indices = @transform_6, window_bounds = array<i64: 8, 128>}]} {
    %c0 = arith.constant 0 : index
    %c0_0 = arith.constant 0 : index
    %0 = vector.load %arg1[%c0, %c0_0] : memref<8x8xi32, #tpu.memory_space<vmem>>, vector<8x8xi32>
    %1 = tpu.iota {dimensions = array<i32: 1>} : vector<8x128xi32>
    %cst = arith.constant 0.000000e+00 : f32
    %2 = vector.broadcast %cst : f32 to vector<8x128xf32>
    %3 = vector.extract_strided_slice %0 {offsets = [0, 0], sizes = [8, 1], strides = [1, 1]} : vector<8x8xi32> to vector<8x1xi32>
    %4 = vector.broadcast %3 : vector<8x1xi32> to vector<8x128xi32>
    %5 = arith.cmpi eq, %4, %1 : vector<8x128xi32>
    %6 = arith.extui %5 : vector<8x128xi1> to vector<8x128xi32>
    %7 = arith.sitofp %6 : vector<8x128xi32> to vector<8x128xf32>
    %8 = arith.addf %2, %7 : vector<8x128xf32>
    %9 = vector.extract_strided_slice %0 {offsets = [0, 1], sizes = [8, 1], strides = [1, 1]} : vector<8x8xi32> to vector<8x1xi32>
    %10 = vector.broadcast %9 : vector<8x1xi32> to vector<8x128xi32>
    %11 = arith.cmpi eq, %10, %1 : vector<8x128xi32>
    %12 = arith.extui %11 : vector<8x128xi1> to vector<8x128xi32>
    %13 = arith.sitofp %12 : vector<8x128xi32> to vector<8x128xf32>
    %14 = arith.addf %8, %13 : vector<8x128xf32>
    %15 = vector.extract_strided_slice %0 {offsets = [0, 2], sizes = [8, 1], strides = [1, 1]} : vector<8x8xi32> to vector<8x1xi32>
    %16 = vector.broadcast %15 : vector<8x1xi32> to vector<8x128xi32>
    %17 = arith.cmpi eq, %16, %1 : vector<8x128xi32>
    %18 = arith.extui %17 : vector<8x128xi1> to vector<8x128xi32>
    %19 = arith.sitofp %18 : vector<8x128xi32> to vector<8x128xf32>
    %20 = arith.addf %14, %19 : vector<8x128xf32>
    %21 = vector.extract_strided_slice %0 {offsets = [0, 3], sizes = [8, 1], strides = [1, 1]} : vector<8x8xi32> to vector<8x1xi32>
    %22 = vector.broadcast %21 : vector<8x1xi32> to vector<8x128xi32>
    %23 = arith.cmpi eq, %22, %1 : vector<8x128xi32>
    %24 = arith.extui %23 : vector<8x128xi1> to vector<8x128xi32>
    %25 = arith.sitofp %24 : vector<8x128xi32> to vector<8x128xf32>
    %26 = arith.addf %20, %25 : vector<8x128xf32>
    %27 = vector.extract_strided_slice %0 {offsets = [0, 4], sizes = [8, 1], strides = [1, 1]} : vector<8x8xi32> to vector<8x1xi32>
    %28 = vector.broadcast %27 : vector<8x1xi32> to vector<8x128xi32>
    %29 = arith.cmpi eq, %28, %1 : vector<8x128xi32>
    %30 = arith.extui %29 : vector<8x128xi1> to vector<8x128xi32>
    %31 = arith.sitofp %30 : vector<8x128xi32> to vector<8x128xf32>
    %32 = arith.addf %26, %31 : vector<8x128xf32>
    %33 = vector.extract_strided_slice %0 {offsets = [0, 5], sizes = [8, 1], strides = [1, 1]} : vector<8x8xi32> to vector<8x1xi32>
    %34 = vector.broadcast %33 : vector<8x1xi32> to vector<8x128xi32>
    %35 = arith.cmpi eq, %34, %1 : vector<8x128xi32>
    %36 = arith.extui %35 : vector<8x128xi1> to vector<8x128xi32>
    %37 = arith.sitofp %36 : vector<8x128xi32> to vector<8x128xf32>
    %38 = arith.addf %32, %37 : vector<8x128xf32>
    %39 = vector.extract_strided_slice %0 {offsets = [0, 6], sizes = [8, 1], strides = [1, 1]} : vector<8x8xi32> to vector<8x1xi32>
    %40 = vector.broadcast %39 : vector<8x1xi32> to vector<8x128xi32>
    %41 = arith.cmpi eq, %40, %1 : vector<8x128xi32>
    %42 = arith.extui %41 : vector<8x128xi1> to vector<8x128xi32>
    %43 = arith.sitofp %42 : vector<8x128xi32> to vector<8x128xf32>
    %44 = arith.addf %38, %43 : vector<8x128xf32>
    %45 = vector.extract_strided_slice %0 {offsets = [0, 7], sizes = [8, 1], strides = [1, 1]} : vector<8x8xi32> to vector<8x1xi32>
    %46 = vector.broadcast %45 : vector<8x1xi32> to vector<8x128xi32>
    %47 = arith.cmpi eq, %46, %1 : vector<8x128xi32>
    %48 = arith.extui %47 : vector<8x128xi1> to vector<8x128xi32>
    %49 = arith.sitofp %48 : vector<8x128xi32> to vector<8x128xf32>
    %50 = arith.addf %44, %49 : vector<8x128xf32>
    %c0_1 = arith.constant 0 : index
    %c0_2 = arith.constant 0 : index
    %51 = vector.load %arg2[%c0_1, %c0_2] : memref<128x128xf32, #tpu.memory_space<vmem>>, vector<128x128xf32>
    %cst_3 = arith.constant dense<0.000000e+00> : vector<8x128xf32>
    %52 = tpu.matmul %50, %51, %cst_3 {dimension_numbers = #tpu.dot_dimension_numbers<[1], [0], [0], [1], [0, 0, 1, 1], [], []>} : vector<8x128xf32>, vector<128x128xf32>, vector<8x128xf32> -> vector<8x128xf32>
    %cst_4 = arith.constant 1.250000e-01 : f32
    %53 = vector.broadcast %cst_4 : f32 to vector<8x128xf32>
    %54 = arith.mulf %52, %53 : vector<8x128xf32>
    %55 = arith.truncf %54 : vector<8x128xf32> to vector<8x128xbf16>
    %c0_5 = arith.constant 0 : index
    %c0_6 = arith.constant 0 : index
    %56 = vector.load %arg3[%c0_5, %c0_6] : memref<128x128xbf16, #tpu.memory_space<vmem>>, vector<128x128xbf16>
    %cst_7 = arith.constant dense<0.000000e+00> : vector<8x128xf32>
    %57 = tpu.matmul %55, %56, %cst_7 {dimension_numbers = #tpu.dot_dimension_numbers<[1], [0], [0], [1], [0, 0, 1, 1], [], []>} : vector<8x128xbf16>, vector<128x128xbf16>, vector<8x128xf32> -> vector<8x128xf32>
    %c0_8 = arith.constant 0 : index
    %c0_9 = arith.constant 0 : index
    %58 = vector.load %arg4[%c0_8, %c0_9] : memref<1x128xf32, #tpu.memory_space<vmem>>, vector<1x128xf32>
    %59 = vector.broadcast %58 : vector<1x128xf32> to vector<8x128xf32>
    %60 = arith.addf %57, %59 : vector<8x128xf32>
    %cst_10 = arith.constant 0.000000e+00 : f32
    %61 = vector.broadcast %cst_10 : f32 to vector<8x128xf32>
    %62 = arith.maximumf %60, %61 : vector<8x128xf32>
    %63 = arith.truncf %62 : vector<8x128xf32> to vector<8x128xbf16>
    %c0_11 = arith.constant 0 : index
    %c0_12 = arith.constant 0 : index
    %64 = vector.load %arg5[%c0_11, %c0_12] : memref<128x128xbf16, #tpu.memory_space<vmem>>, vector<128x128xbf16>
    %cst_13 = arith.constant dense<0.000000e+00> : vector<8x128xf32>
    %65 = tpu.matmul %63, %64, %cst_13 {dimension_numbers = #tpu.dot_dimension_numbers<[1], [0], [0], [1], [0, 0, 1, 1], [], []>} : vector<8x128xbf16>, vector<128x128xbf16>, vector<8x128xf32> -> vector<8x128xf32>
    %c0_14 = arith.constant 0 : index
    %c0_15 = arith.constant 0 : index
    %66 = vector.load %arg6[%c0_14, %c0_15] : memref<1x128xf32, #tpu.memory_space<vmem>>, vector<1x128xf32>
    %67 = vector.broadcast %66 : vector<1x128xf32> to vector<8x128xf32>
    %68 = arith.addf %65, %67 : vector<8x128xf32>
    %c0_16 = arith.constant 0 : index
    %c0_17 = arith.constant 0 : index
    %69 = vector.load %arg7[%c0_16, %c0_17] : memref<8x128xf32, #tpu.memory_space<vmem>>, vector<8x128xf32>
    tpu.vector_store %arg7[%c0_16, %c0_17], %68 {strides = array<i32>} : memref<8x128xf32, #tpu.memory_space<vmem>>, vector<8x128xf32>,
    return
  }
  func.func @transform_0(%arg0: i32) -> (i32, i32) {
    %c0_i32 = arith.constant 0 : i32
    %c0_i32_0 = arith.constant 0 : i32
    return %arg0, %c0_i32 : i32, i32
  }
  func.func @transform_1(%arg0: i32) -> (i32, i32) {
    %c0_i32 = arith.constant 0 : i32
    %c0_i32_0 = arith.constant 0 : i32
    %c0_i32_1 = arith.constant 0 : i32
    return %c0_i32, %c0_i32_0 : i32, i32
  }
  func.func @transform_2(%arg0: i32) -> (i32, i32) {
    %c0_i32 = arith.constant 0 : i32
    %c0_i32_0 = arith.constant 0 : i32
    %c0_i32_1 = arith.constant 0 : i32
    return %c0_i32, %c0_i32_0 : i32, i32
  }
  func.func @transform_3(%arg0: i32) -> (i32, i32) {
    %c0_i32 = arith.constant 0 : i32
    %c0_i32_0 = arith.constant 0 : i32
    %c0_i32_1 = arith.constant 0 : i32
    return %c0_i32, %c0_i32_0 : i32, i32
  }
  func.func @transform_4(%arg0: i32) -> (i32, i32) {
    %c0_i32 = arith.constant 0 : i32
    %c0_i32_0 = arith.constant 0 : i32
    %c0_i32_1 = arith.constant 0 : i32
    return %c0_i32, %c0_i32_0 : i32, i32
  }
  func.func @transform_5(%arg0: i32) -> (i32, i32) {
    %c0_i32 = arith.constant 0 : i32
    %c0_i32_0 = arith.constant 0 : i32
    %c0_i32_1 = arith.constant 0 : i32
    return %c0_i32, %c0_i32_0 : i32, i32
  }
  func.func @transform_6(%arg0: i32) -> (i32, i32) {
    %c0_i32 = arith.constant 0 : i32
    %c0_i32_0 = arith.constant 0 : i32
    return %arg0, %c0_i32 : i32, i32
  }
}

</mosaic_0001>

<llo_original>
// kernel: tpu_custom_call.1
$region0: #{tpu_custom_call.1}
  #allocation0 [shape = 'u32[]', space=smem, size = 0x4, offset = 0x4, fixed_abs, tag = 'smem constant byte address 0x4 - core index']
  #allocation1 [shape = 'u32[144,128]{1,0:T(1,128)}', space=vmem, size = 0x12000, scoped, tag = 'internal scratch']
  %s0 = inlined_call_operand.hbm [shape: s32[8,8], index: 0, kind: input, shape index: {}]
  %s1 = inlined_call_operand.hbm [shape: f32[128,128], index: 1, kind: input, shape index: {}]
  %s2 = inlined_call_operand.hbm [shape: bf16[128,128], index: 2, kind: input, shape index: {}]
  %s3 = inlined_call_operand.vmem [shape: f32[1,128], index: 3, kind: input, shape index: {}]
  %s4 = inlined_call_operand.hbm [shape: bf16[128,128], index: 4, kind: input, shape index: {}]
  %s5 = inlined_call_operand.vmem [shape: f32[1,128], index: 5, kind: input, shape index: {}]
  %s6 = inlined_call_operand.hbm [shape: f32[8,128], index: 6, kind: output, shape index: {}]
  %s7 = sld [smem:[#allocation0]]
  $region50: #{tpu_custom_call.1} parent=0
    _
  %s9 = ssub.s32 1, %s7
  %s10 = scalar_select 0, %s9, %s7
  $region1: #{tpu_custom_call.1} parent=0
    #allocation2 [shape = 'u8[4096]{0}', space=vmem, size = 0x1000, scoped, tag = 'input window, operand 0, single buffered']
    #allocation3 [shape = 's32[1]{0}', space=sflag, size = 0x4, scoped, tag = 'scoped memory for tpu_custom_call.1']
    #allocation4 [shape = 's32[1]{0}', space=sflag, size = 0x4, scoped, tag = 'scoped memory for tpu_custom_call.1']
    #allocation5 [shape = 'u8[65536]{0}', space=vmem, size = 0x10000, scoped, tag = 'input window, operand 1, single buffered']
    #allocation6 [shape = 's32[1]{0}', space=sflag, size = 0x4, scoped, tag = 'scoped memory for tpu_custom_call.1']
    #allocation7 [shape = 'u8[32768]{0}', space=vmem, size = 0x8000, scoped, tag = 'input window, operand 2, single buffered']
    #allocation8 [shape = 'u8[32768]{0}', space=vmem, size = 0x8000, scoped, tag = 'input window, operand 4, single buffered']
    #allocation9 [shape = 's32[1]{0}', space=sflag, size = 0x4, scoped, tag = 'scoped memory for tpu_custom_call.1']
    #allocation10 [shape = 'u8[4096]{0}', space=vmem, size = 0x1000, scoped, tag = 'output window, operand 0, single buffered']
    %11 = vsyncpa [#allocation3], 0
    %12 = vsyncpa [#allocation6], 0
    %13 = vsyncpa [#allocation9], 0
    %14 = vsyncpa [#allocation4], 0
    // Predicated region
    $region2: #{tpu_custom_call.1} parent=1 // pred_check
      _
    $region3: #{tpu_custom_call.1} parent=1 // pred_check_branch
      %16 = sbr.rel (0) target = $region5
    $region4: #{tpu_custom_call.1} parent=1 // pred_region
      %s18 = ssub.s32 128, 128
      %19 = vsyncadd [#allocation3], %s18
      %s21 = sshll.u32 [#allocation2], 4
      %s22 = int_to_ptr.vmem [resolvable:$true] %s21
      %24 = dma.hbm_to_vmem [thread:$0]  %s0, 128, %s22, [#allocation3]
    $region5: #{tpu_custom_call.1} parent=1 // pred_fallthru
      _
    // Predicated region
    $region6: #{tpu_custom_call.1} parent=1 // pred_check
      _
    $region7: #{tpu_custom_call.1} parent=1 // pred_check_branch
      %26 = sbr.rel (0) target = $region9
    $region8: #{tpu_custom_call.1} parent=1 // pred_region
      %s28 = ssub.s32 2048, 2048
      %29 = vsyncadd [#allocation6], %s28
      %s30 = sshll.u32 [#allocation5], 4
      %s31 = int_to_ptr.vmem [resolvable:$true] %s30
      %36 = dma.hbm_to_vmem [thread:$0]  %s1, 2048, %s31, [#allocation6], 128, 128, 8
    $region9: #{tpu_custom_call.1} parent=1 // pred_fallthru
      _
    // Predicated region
    $region10: #{tpu_custom_call.1} parent=1 // pred_check
      _
    $region11: #{tpu_custom_call.1} parent=1 // pred_check_branch
      %38 = sbr.rel (0) target = $region13
    $region12: #{tpu_custom_call.1} parent=1 // pred_region
      %s40 = ssub.s32 1024, 1024
      %41 = vsyncadd [#allocation6], %s40
      %s42 = sshll.u32 [#allocation7], 4
      %s43 = int_to_ptr.vmem [resolvable:$true] %s42
      %48 = dma.hbm_to_vmem [thread:$0]  %s2, 1024, %s43, [#allocation6], 64, 64, 4
    $region13: #{tpu_custom_call.1} parent=1 // pred_fallthru
      _
    // Predicated region
    $region14: #{tpu_custom_call.1} parent=1 // pred_check
      _
    $region15: #{tpu_custom_call.1} parent=1 // pred_check_branch
      %50 = sbr.rel (0) target = $region17
    $region16: #{tpu_custom_call.1} parent=1 // pred_region
      _
    $region17: #{tpu_custom_call.1} parent=1 // pred_fallthru
      _
    // Predicated region
    $region18: #{tpu_custom_call.1} parent=1 // pred_check
      _
    $region19: #{tpu_custom_call.1} parent=1 // pred_check_branch
      %52 = sbr.rel (0) target = $region21
    $region20: #{tpu_custom_call.1} parent=1 // pred_region
      %s54 = ssub.s32 1024, 1024
      %55 = vsyncadd [#allocation9], %s54
      %s56 = sshll.u32 [#allocation8], 4
      %s57 = int_to_ptr.vmem [resolvable:$true] %s56
      %62 = dma.hbm_to_vmem [thread:$0]  %s4, 1024, %s57, [#allocation9], 64, 64, 4
    $region21: #{tpu_custom_call.1} parent=1 // pred_fallthru
      _
    // Predicated region
    $region22: #{tpu_custom_call.1} parent=1 // pred_check
      _
    $region23: #{tpu_custom_call.1} parent=1 // pred_check_branch
      %64 = sbr.rel (0) target = $region25
    $region24: #{tpu_custom_call.1} parent=1 // pred_region
      _
    $region25: #{tpu_custom_call.1} parent=1 // pred_fallthru
      _
    // Predicated region
    $region26: #{tpu_custom_call.1} parent=1 // pred_check
      _
    $region27: #{tpu_custom_call.1} parent=1 // pred_check_branch
      %66 = sbr.rel (0) target = $region29
    $region28: #{tpu_custom_call.1} parent=1 // pred_region
      %67 = dma.done [#allocation3], 128
    $region29: #{tpu_custom_call.1} parent=1 // pred_fallthru
      _
    // Predicated region
    $region30: #{tpu_custom_call.1} parent=1 // pred_check
      _
    $region31: #{tpu_custom_call.1} parent=1 // pred_check_branch
      %69 = sbr.rel (0) target = $region33
    $region32: #{tpu_custom_call.1} parent=1 // pred_region
      %70 = dma.done [#allocation6], 2048
    $region33: #{tpu_custom_call.1} parent=1 // pred_fallthru
      _
    // Predicated region
    $region34: #{tpu_custom_call.1} parent=1 // pred_check
      _
    $region35: #{tpu_custom_call.1} parent=1 // pred_check_branch
      %72 = sbr.rel (0) target = $region37
    $region36: #{tpu_custom_call.1} parent=1 // pred_region
      %73 = dma.done [#allocation6], 1024
    $region37: #{tpu_custom_call.1} parent=1 // pred_fallthru
      _
    // Predicated region
    $region38: #{tpu_custom_call.1} parent=1 // pred_check
      _
    $region39: #{tpu_custom_call.1} parent=1 // pred_check_branch
      %75 = sbr.rel (0) target = $region41
    $region40: #{tpu_custom_call.1} parent=1 // pred_region
      %76 = dma.done [#allocation9], 1024
    $region41: #{tpu_custom_call.1} parent=1 // pred_fallthru
      _
    %v78 = vld [vmem:[#allocation2] sm:$0xff]
    %v79 = vlaneseq
    %v80 = vand.u32 %v79, 127
    %81 = vset.pattern.permute.xlu0 0
    %82 = vperm.xlu0 %81, %v78
    %v83 = vpop.permute.xlu0 %82
    %vm84 = vcmp.eq.s32.totalorder %v83, %v80
    %v85 = vsel %vm84, 1, 0
    %v86 = vcvt.s32.f32 %v85
    %v87 = vadd.f32 %v86, 0.0
    %88 = vset.pattern.permute.xlu0 1
    %89 = vperm.xlu0 %88, %v78
    %v90 = vpop.permute.xlu0 %89
    %vm91 = vcmp.eq.s32.totalorder %v90, %v80
    %v92 = vsel %vm91, 1, 0
    %v93 = vcvt.s32.f32 %v92
    %v94 = vadd.f32 %v87, %v93
    %95 = vset.pattern.permute.xlu0 2
    %96 = vperm.xlu0 %95, %v78
    %v97 = vpop.permute.xlu0 %96
    %vm98 = vcmp.eq.s32.totalorder %v97, %v80
    %v99 = vsel %vm98, 1, 0
    %v100 = vcvt.s32.f32 %v99
    %v101 = vadd.f32 %v94, %v100
    %102 = vset.pattern.permute.xlu0 3
    %103 = vperm.xlu0 %102, %v78
    %v104 = vpop.permute.xlu0 %103
    %vm105 = vcmp.eq.s32.totalorder %v104, %v80
    %v106 = vsel %vm105, 1, 0
    %v107 = vcvt.s32.f32 %v106
    %v108 = vadd.f32 %v101, %v107
    %109 = vset.pattern.permute.xlu0 4
    %110 = vperm.xlu0 %109, %v78
    %v111 = vpop.permute.xlu0 %110
    %vm112 = vcmp.eq.s32.totalorder %v111, %v80
    %v113 = vsel %vm112, 1, 0
    %v114 = vcvt.s32.f32 %v113
    %v115 = vadd.f32 %v108, %v114
    %116 = vset.pattern.permute.xlu0 5
    %117 = vperm.xlu0 %116, %v78
    %v118 = vpop.permute.xlu0 %117
    %vm119 = vcmp.eq.s32.totalorder %v118, %v80
    %v120 = vsel %vm119, 1, 0
    %v121 = vcvt.s32.f32 %v120
    %v122 = vadd.f32 %v115, %v121
    %123 = vset.pattern.permute.xlu0 6
    %124 = vperm.xlu0 %123, %v78
    %v125 = vpop.permute.xlu0 %124
    %vm126 = vcmp.eq.s32.totalorder %v125, %v80
    %v127 = vsel %vm126, 1, 0
    %v128 = vcvt.s32.f32 %v127
    %v129 = vadd.f32 %v122, %v128
    %130 = vset.pattern.permute.xlu0 7
    %131 = vperm.xlu0 %130, %v78
    %v132 = vpop.permute.xlu0 %131
    %vm133 = vcmp.eq.s32.totalorder %v132, %v80
    %v134 = vsel %vm133, 1, 0
    %v135 = vcvt.s32.f32 %v134
    %v136 = vadd.f32 %v129, %v135
    %v137 = vld [vmem:[#allocation5] sm:$0xff]
    %v138 = vld [vmem:[#allocation5 + $0x8] sm:$0xff]
    %v139 = vld [vmem:[#allocation5 + $0x10] sm:$0xff]
    %v140 = vld [vmem:[#allocation5 + $0x18] sm:$0xff]
    %v141 = vld [vmem:[#allocation5 + $0x20] sm:$0xff]
    %v142 = vld [vmem:[#allocation5 + $0x28] sm:$0xff]
    %v143 = vld [vmem:[#allocation5 + $0x30] sm:$0xff]
    %v144 = vld [vmem:[#allocation5 + $0x38] sm:$0xff]
    %v145 = vld [vmem:[#allocation5 + $0x40] sm:$0xff]
    %v146 = vld [vmem:[#allocation5 + $0x48] sm:$0xff]
    %v147 = vld [vmem:[#allocation5 + $0x50] sm:$0xff]
    %v148 = vld [vmem:[#allocation5 + $0x58] sm:$0xff]
    %v149 = vld [vmem:[#allocation5 + $0x60] sm:$0xff]
    %v150 = vld [vmem:[#allocation5 + $0x68] sm:$0xff]
    %v151 = vld [vmem:[#allocation5 + $0x70] sm:$0xff]
    %v152 = vld [vmem:[#allocation5 + $0x78] sm:$0xff]
    %153 = vmatprep.subr.mxu0 0.0
    %154 = vmatpush1.msra.mxu0 %v152
    %155 = vmatprep.subr.mxu0 0.0
    %156 = vmatpush1.msra.mxu0 %v151
    %157 = vmatprep.subr.mxu0 0.0
    %158 = vmatpush1.msra.mxu0 %v150
    %159 = vmatprep.subr.mxu0 0.0
    %160 = vmatpush1.msra.mxu0 %v149
    %161 = vmatprep.subr.mxu0 0.0
    %162 = vmatpush1.msra.mxu0 %v148
    %163 = vmatprep.subr.mxu0 0.0
    %164 = vmatpush1.msra.mxu0 %v147
    %165 = vmatprep.subr.mxu0 0.0
    %166 = vmatpush1.msra.mxu0 %v146
    %167 = vmatprep.subr.mxu0 0.0
    %168 = vmatpush1.msra.mxu0 %v145
    %169 = vmatprep.subr.mxu0 0.0
    %170 = vmatpush1.msra.mxu0 %v144
    %171 = vmatprep.subr.mxu0 0.0
    %172 = vmatpush1.msra.mxu0 %v143
    %173 = vmatprep.subr.mxu0 0.0
    %174 = vmatpush1.msra.mxu0 %v142
    %175 = vmatprep.subr.mxu0 0.0
    %176 = vmatpush1.msra.mxu0 %v141
    %177 = vmatprep.subr.mxu0 0.0
    %178 = vmatpush1.msra.mxu0 %v140
    %179 = vmatprep.subr.mxu0 0.0
    %180 = vmatpush1.msra.mxu0 %v139
    %181 = vmatprep.subr.mxu0 0.0
    %182 = vmatpush1.msra.mxu0 %v138
    %183 = vmatprep.subr.mxu0 0.0
    %184 = vmatpush1.msra.mxu0 %v137
    %185 = vmatprep.subr.mxu0 0.0
    %186 = vmatpush2.msra.mxu0 0.0
    %187 = vmatprep.subr.mxu0 0.0
    %188 = vmatpush2.msra.mxu0 0.0
    %189 = vmatprep.subr.mxu0 0.0
    %190 = vmatpush2.msra.mxu0 0.0
    %191 = vmatprep.subr.mxu0 0.0
    %192 = vmatpush2.msra.mxu0 0.0
    %193 = vmatprep.subr.mxu0 0.0
    %194 = vmatpush2.msra.mxu0 0.0
    %195 = vmatprep.subr.mxu0 0.0
    %196 = vmatpush2.msra.mxu0 0.0
    %197 = vmatprep.subr.mxu0 0.0
    %198 = vmatpush2.msra.mxu0 0.0
    %199 = vmatprep.subr.mxu0 0.0
    %200 = vmatpush2.msra.mxu0 0.0
    %201 = vmatprep.subr.mxu0 0.0
    %202 = vmatpush2.msra.mxu0 0.0
    %203 = vmatprep.subr.mxu0 0.0
    %204 = vmatpush2.msra.mxu0 0.0
    %205 = vmatprep.subr.mxu0 0.0
    %206 = vmatpush2.msra.mxu0 0.0
    %207 = vmatprep.subr.mxu0 0.0
    %208 = vmatpush2.msra.mxu0 0.0
    %209 = vmatprep.subr.mxu0 0.0
    %210 = vmatpush2.msra.mxu0 0.0
    %211 = vmatprep.subr.mxu0 0.0
    %212 = vmatpush2.msra.mxu0 0.0
    %213 = vmatprep.subr.mxu0 0.0
    %214 = vmatpush2.msra.mxu0 0.0
    %215 = vmatprep.subr.mxu0 0.0
    %216 = vmatpush2.msra.mxu0 0.0
    %217 = vmatprep.mubr.f32.mxu0 0.0
    %218 = vmatmul.mubr.f32.gmra.mxu0 %v136
    %v219 = vpop.f32.mrf.mxu0
    %v220 = vadd.f32 0.0, %v219
    %v221 = vpop.f32.mrf.mxu0
    %222 = vdwg.mxu0
    %v223 = vmul.f32 %v220, 0.125
    %v224 = vpack.c.bf16 %v223, %v223
    %v225 = vld [vmem:[#allocation7] sm:$0xf]
    %v226 = vld [vmem:[#allocation7 + $0x4] sm:$0xf]
    %v227 = vld [vmem:[#allocation7 + $0x8] sm:$0xf]
    %v228 = vld [vmem:[#allocation7 + $0xc] sm:$0xf]
    %v229 = vld [vmem:[#allocation7 + $0x10] sm:$0xf]
    %v230 = vld [vmem:[#allocation7 + $0x14] sm:$0xf]
    %v231 = vld [vmem:[#allocation7 + $0x18] sm:$0xf]
    %v232 = vld [vmem:[#allocation7 + $0x1c] sm:$0xf]
    %v233 = vld [vmem:[#allocation7 + $0x20] sm:$0xf]
    %v234 = vld [vmem:[#allocation7 + $0x24] sm:$0xf]
    %v235 = vld [vmem:[#allocation7 + $0x28] sm:$0xf]
    %v236 = vld [vmem:[#allocation7 + $0x2c] sm:$0xf]
    %v237 = vld [vmem:[#allocation7 + $0x30] sm:$0xf]
    %v238 = vld [vmem:[#allocation7 + $0x34] sm:$0xf]
    %v239 = vld [vmem:[#allocation7 + $0x38] sm:$0xf]
    %v240 = vld [vmem:[#allocation7 + $0x3c] sm:$0xf]
    %v241 = vld [vmem:[%s3] sm:$0x1]
    %v243 = vlaneseq
    %v244 = vshrl.u32 %v243, 7
    %v245 = vsub.s32 0, %v244
    %v246 = vrot.slane %v241, %v245
    %v264 = vunpack.c.l.b16 %v225
    %v265 = vunpack.c.l.b16 %v226
    %v266 = vunpack.c.l.b16 %v227
    %v267 = vunpack.c.l.b16 %v228
    %v268 = vunpack.c.l.b16 %v229
    %v269 = vunpack.c.l.b16 %v230
    %v270 = vunpack.c.l.b16 %v231
    %v271 = vunpack.c.l.b16 %v232
    %v272 = vunpack.c.l.b16 %v233
    %v273 = vunpack.c.l.b16 %v234
    %v274 = vunpack.c.l.b16 %v235
    %v275 = vunpack.c.l.b16 %v236
    %v276 = vunpack.c.l.b16 %v237
    %v277 = vunpack.c.l.b16 %v238
    %v278 = vunpack.c.l.b16 %v239
    %v279 = vunpack.c.l.b16 %v240
    %v280 = vpack.c.b16 %v265, %v264
    %v281 = vpack.c.b16 %v267, %v266
    %v282 = vpack.c.b16 %v269, %v268
    %v283 = vpack.c.b16 %v271, %v270
    %v284 = vpack.c.b16 %v273, %v272
    %v285 = vpack.c.b16 %v275, %v274
    %v286 = vpack.c.b16 %v277, %v276
    %v287 = vpack.c.b16 %v279, %v278
    %296 = vmatprep.subr.bf16.mxu0 0
    %297 = vmatpush1.bf16.msra.mxu0 %v287
    %298 = vmatprep.subr.bf16.mxu0 0
    %299 = vmatpush1.bf16.msra.mxu0 %v286
    %300 = vmatprep.subr.bf16.mxu0 0
    %301 = vmatpush1.bf16.msra.mxu0 %v285
    %302 = vmatprep.subr.bf16.mxu0 0
    %303 = vmatpush1.bf16.msra.mxu0 %v284
    %304 = vmatprep.subr.bf16.mxu0 0
    %305 = vmatpush1.bf16.msra.mxu0 %v283
    %306 = vmatprep.subr.bf16.mxu0 0
    %307 = vmatpush1.bf16.msra.mxu0 %v282
    %308 = vmatprep.subr.bf16.mxu0 0
    %309 = vmatpush1.bf16.msra.mxu0 %v281
    %310 = vmatprep.subr.bf16.mxu0 0
    %311 = vmatpush1.bf16.msra.mxu0 %v280
    %312 = vmatprep.subr.bf16.mxu0 0
    %313 = vmatpush2.bf16.msra.mxu0 0
    %314 = vmatprep.subr.bf16.mxu0 0
    %315 = vmatpush2.bf16.msra.mxu0 0
    %316 = vmatprep.subr.bf16.mxu0 0
    %317 = vmatpush2.bf16.msra.mxu0 0
    %318 = vmatprep.subr.bf16.mxu0 0
    %319 = vmatpush2.bf16.msra.mxu0 0
    %320 = vmatprep.subr.bf16.mxu0 0
    %321 = vmatpush2.bf16.msra.mxu0 0
    %322 = vmatprep.subr.bf16.mxu0 0
    %323 = vmatpush2.bf16.msra.mxu0 0
    %324 = vmatprep.subr.bf16.mxu0 0
    %325 = vmatpush2.bf16.msra.mxu0 0
    %326 = vmatprep.subr.bf16.mxu0 0
    %327 = vmatpush2.bf16.msra.mxu0 0
    %328 = vmatprep.mubr.bf16.mxu0 0
    %329 = vmatmul.mubr.bf16.gmra.mxu0 %v224
    %v330 = vpop.f32.mrf.mxu0
    %v331 = vadd.f32 %v246, %v330
    %v332 = vpop.f32.mrf.mxu0
    %v333 = vpop.f32.mrf.mxu0
    %v334 = vpop.f32.mrf.mxu0
    %335 = vdwg.mxu0
    %v336 = vmax.f32 %v331, 0.0
    %v337 = vpack.c.bf16 %v336, %v336
    %v338 = vld [vmem:[#allocation8] sm:$0xf]
    %v339 = vld [vmem:[#allocation8 + $0x4] sm:$0xf]
    %v340 = vld [vmem:[#allocation8 + $0x8] sm:$0xf]
    %v341 = vld [vmem:[#allocation8 + $0xc] sm:$0xf]
    %v342 = vld [vmem:[#allocation8 + $0x10] sm:$0xf]
    %v343 = vld [vmem:[#allocation8 + $0x14] sm:$0xf]
    %v344 = vld [vmem:[#allocation8 + $0x18] sm:$0xf]
    %v345 = vld [vmem:[#allocation8 + $0x1c] sm:$0xf]
    %v346 = vld [vmem:[#allocation8 + $0x20] sm:$0xf]
    %v347 = vld [vmem:[#allocation8 + $0x24] sm:$0xf]
    %v348 = vld [vmem:[#allocation8 + $0x28] sm:$0xf]
    %v349 = vld [vmem:[#allocation8 + $0x2c] sm:$0xf]
    %v350 = vld [vmem:[#allocation8 + $0x30] sm:$0xf]
    %v351 = vld [vmem:[#allocation8 + $0x34] sm:$0xf]
    %v352 = vld [vmem:[#allocation8 + $0x38] sm:$0xf]
    %v353 = vld [vmem:[#allocation8 + $0x3c] sm:$0xf]
    %v354 = vld [vmem:[%s5] sm:$0x1]
    %v356 = vlaneseq
    %v357 = vshrl.u32 %v356, 7
    %v358 = vsub.s32 0, %v357
    %v359 = vrot.slane %v354, %v358
    %v377 = vunpack.c.l.b16 %v338
    %v378 = vunpack.c.l.b16 %v339
    %v379 = vunpack.c.l.b16 %v340
    %v380 = vunpack.c.l.b16 %v341
    %v381 = vunpack.c.l.b16 %v342
    %v382 = vunpack.c.l.b16 %v343
    %v383 = vunpack.c.l.b16 %v344
    %v384 = vunpack.c.l.b16 %v345
    %v385 = vunpack.c.l.b16 %v346
    %v386 = vunpack.c.l.b16 %v347
    %v387 = vunpack.c.l.b16 %v348
    %v388 = vunpack.c.l.b16 %v349
    %v389 = vunpack.c.l.b16 %v350
    %v390 = vunpack.c.l.b16 %v351
    %v391 = vunpack.c.l.b16 %v352
    %v392 = vunpack.c.l.b16 %v353
    %v393 = vpack.c.b16 %v378, %v377
    %v394 = vpack.c.b16 %v380, %v379
    %v395 = vpack.c.b16 %v382, %v381
    %v396 = vpack.c.b16 %v384, %v383
    %v397 = vpack.c.b16 %v386, %v385
    %v398 = vpack.c.b16 %v388, %v387
    %v399 = vpack.c.b16 %v390, %v389
    %v400 = vpack.c.b16 %v392, %v391
    %409 = vmatprep.subr.bf16.mxu0 0
    %410 = vmatpush1.bf16.msra.mxu0 %v400
    %411 = vmatprep.subr.bf16.mxu0 0
    %412 = vmatpush1.bf16.msra.mxu0 %v399
    %413 = vmatprep.subr.bf16.mxu0 0
    %414 = vmatpush1.bf16.msra.mxu0 %v398
    %415 = vmatprep.subr.bf16.mxu0 0
    %416 = vmatpush1.bf16.msra.mxu0 %v397
    %417 = vmatprep.subr.bf16.mxu0 0
    %418 = vmatpush1.bf16.msra.mxu0 %v396
    %419 = vmatprep.subr.bf16.mxu0 0
    %420 = vmatpush1.bf16.msra.mxu0 %v395
    %421 = vmatprep.subr.bf16.mxu0 0
    %422 = vmatpush1.bf16.msra.mxu0 %v394
    %423 = vmatprep.subr.bf16.mxu0 0
    %424 = vmatpush1.bf16.msra.mxu0 %v393
    %425 = vmatprep.subr.bf16.mxu0 0
    %426 = vmatpush2.bf16.msra.mxu0 0
    %427 = vmatprep.subr.bf16.mxu0 0
    %428 = vmatpush2.bf16.msra.mxu0 0
    %429 = vmatprep.subr.bf16.mxu0 0
    %430 = vmatpush2.bf16.msra.mxu0 0
    %431 = vmatprep.subr.bf16.mxu0 0
    %432 = vmatpush2.bf16.msra.mxu0 0
    %433 = vmatprep.subr.bf16.mxu0 0
    %434 = vmatpush2.bf16.msra.mxu0 0
    %435 = vmatprep.subr.bf16.mxu0 0
    %436 = vmatpush2.bf16.msra.mxu0 0
    %437 = vmatprep.subr.bf16.mxu0 0
    %438 = vmatpush2.bf16.msra.mxu0 0
    %439 = vmatprep.subr.bf16.mxu0 0
    %440 = vmatpush2.bf16.msra.mxu0 0
    %441 = vmatprep.mubr.bf16.mxu0 0
    %442 = vmatmul.mubr.bf16.gmra.mxu0 %v337
    %v443 = vpop.f32.mrf.mxu0
    %v444 = vadd.f32 %v359, %v443
    %v445 = vpop.f32.mrf.mxu0
    %v446 = vpop.f32.mrf.mxu0
    %v447 = vpop.f32.mrf.mxu0
    %448 = vdwg.mxu0
    %449 = vst [vmem:[#allocation10] sm:$0xff] %v444
    // Predicated region
    $region42: #{tpu_custom_call.1} parent=1 // pred_check
      _
    $region43: #{tpu_custom_call.1} parent=1 // pred_check_branch
      %451 = sbr.rel (0) target = $region45
    $region44: #{tpu_custom_call.1} parent=1 // pred_region
      %s453 = ssub.s32 128, 128
      %454 = vsyncadd [#allocation4], %s453
      %s456 = sshll.u32 [#allocation10], 4
      %s457 = int_to_ptr.vmem [resolvable:$true] %s456
      %459 = dma.vmem_to_hbm [thread:$0]  %s457, 128, %s6, [#allocation4]
    $region45: #{tpu_custom_call.1} parent=1 // pred_fallthru
      _
    // Predicated region
    $region46: #{tpu_custom_call.1} parent=1 // pred_check
      _
    $region47: #{tpu_custom_call.1} parent=1 // pred_check_branch
      %461 = sbr.rel (0) target = $region49
    $region48: #{tpu_custom_call.1} parent=1 // pred_region
      %462 = dma.done [#allocation4], 128
    $region49: #{tpu_custom_call.1} parent=1 // pred_fallthru
      _
    %463 = vsyncpa [#allocation3], 1
    %464 = vsyncpa [#allocation6], 1
    %465 = vsyncpa [#allocation9], 1
    %466 = vsyncpa [#allocation4], 1

</llo_original>
